<compile_context>
chip_gen: v5e
topology: v5e:2x2
jax: 0.10.0
libtpu: 0.0.40
codegen_flags: <defaults>
</compile_context>

<pallas_src>
import jax
import jax.numpy as jnp
from jax.experimental import pallas as pl
from jax.experimental.pallas import tpu as pltpu


def _se_kernel(x_ref, w1_ref, w2_ref, o_ref):
    """x_ref: (B, C, HW); w1_ref: (Cr, C); w2_ref: (C, Cr); o_ref: (B, C, HW)."""
    w1 = w1_ref[...]                      # (Cr, C)   fc[0].weight
    w2 = w2_ref[...]                      # (C, Cr)   fc[2].weight
    B = x_ref.shape[0]
    inv_hw = 1.0 / x_ref.shape[2]

    # Static (compile-time) loop over the small batch; each iteration is 2-D.
    for b in range(B):
        xb = x_ref[b]                                              # (C, HW)
        # Squeeze: global average pool -> (C, 1) column (cross-lane reduce).
        pooled = jnp.sum(xb, axis=-1, keepdims=True) * inv_hw      # (C, 1)
        # Excite: two bias-free mat-vecs on the MXU, ReLU then sigmoid.
        h = jnp.maximum(
            jnp.dot(w1, pooled, preferred_element_type=jnp.float32), 0.0)  # (Cr, 1)
        z = jnp.dot(w2, h, preferred_element_type=jnp.float32)             # (C, 1)
        s = 1.0 / (1.0 + jnp.exp(-z))                              # (C, 1) sigmoid
        # Scale: per-channel gate broadcasts along the lane (spatial) axis.
        o_ref[b] = (xb * s).astype(o_ref.dtype)


def se_layer(x, w1, w2):
    """x: (B, C, H, W) f32; w1: (C//r, C); w2: (C, C//r) -> (B, C, H, W)."""
    B, C, H, W = x.shape
    HW = H * W
    Cr = w1.shape[0]
    x2 = x.reshape(B, C, HW)

    vmem = pl.BlockSpec(memory_space=pltpu.MemorySpace.VMEM)
    cost = pl.CostEstimate(
        flops=2 * B * (C * HW            # pooling adds + gating muls
                       + 2 * Cr * C),    # two mat-vecs
        transcendentals=B * C,           # sigmoid exp
        bytes_accessed=(2 * B * C * HW + 2 * Cr * C) * 4,
    )

    out = pl.pallas_call(
        _se_kernel,
        out_shape=jax.ShapeDtypeStruct((B, C, HW), x.dtype),
        in_specs=[vmem, vmem, vmem],
        out_specs=vmem,
        cost_estimate=cost,
    )(x2, w1, w2)
    return out.reshape(B, C, H, W)


def _reference(x, w1, w2):
    y = x.mean(axis=(2, 3))                          # (B, C)
    y = jnp.maximum(y @ w1.T, 0.0)                   # (B, Cr)
    y = 1.0 / (1.0 + jnp.exp(-(y @ w2.T)))           # (B, C)
    return x * y[:, :, None, None]


if __name__ == "__main__":
    B, C, H, W = 2, 64, 16, 16
    reduction = 16
    Cr = C // reduction

    key = jax.random.PRNGKey(0)
    kx, k1, k2 = jax.random.split(key, 3)

    # Deterministic, checkpoint-free init matching nn.Linear(bias=False):
    # U(-1/sqrt(fan_in), 1/sqrt(fan_in)).
    lim1 = 1.0 / jnp.sqrt(jnp.float32(C))
    lim2 = 1.0 / jnp.sqrt(jnp.float32(Cr))
    w1 = jax.random.uniform(k1, (Cr, C), jnp.float32, -lim1, lim1)   # fc[0].weight
    w2 = jax.random.uniform(k2, (C, Cr), jnp.float32, -lim2, lim2)   # fc[2].weight

    x = jax.random.normal(kx, (B, C, H, W), jnp.float32)

    out = se_layer(x, w1, w2)
    out = jax.block_until_ready(out)

    ref = _reference(x, w1, w2)
    assert out.shape == (B, C, H, W)
    assert jnp.allclose(out, ref, atol=1e-3, rtol=1e-3), \
        float(jnp.max(jnp.abs(out - ref)))
    print("KERNEL_OK")
</pallas_src>

<mosaic_0001>
module attributes {stable_mosaic.version = 11 : i64} {
  func.func @_se_kernel(%arg0: memref<2x64x256xf32, #tpu.memory_space<vmem>>, %arg1: memref<4x64xf32, #tpu.memory_space<vmem>>, %arg2: memref<64x4xf32, #tpu.memory_space<vmem>>, %arg3: memref<2x64x256xf32, #tpu.memory_space<vmem>>) attributes {dimension_semantics = [], scalar_prefetch = 0 : i64, scratch_operands = 0 : i64, tpu.core_type = #tpu.core_type<tc>} {
    %c0 = arith.constant 0 : index
    %c0_0 = arith.constant 0 : index
    %0 = vector.load %arg1[%c0, %c0_0] : memref<4x64xf32, #tpu.memory_space<vmem>>, vector<4x64xf32>
    %c0_1 = arith.constant 0 : index
    %c0_2 = arith.constant 0 : index
    %1 = vector.load %arg2[%c0_1, %c0_2] : memref<64x4xf32, #tpu.memory_space<vmem>>, vector<64x4xf32>
    %c0_3 = arith.constant 0 : index
    %c0_4 = arith.constant 0 : index
    %c0_5 = arith.constant 0 : index
    %2 = vector.load %arg0[%c0_3, %c0_4, %c0_5] : memref<2x64x256xf32, #tpu.memory_space<vmem>>, vector<1x64x256xf32>
    %3 = vector.shape_cast %2 : vector<1x64x256xf32> to vector<64x256xf32>
    %cst = arith.constant dense<0.000000e+00> : vector<64xf32>
    %4 = vector.multi_reduction <add>, %3, %cst [1] : vector<64x256xf32> to vector<64xf32>
    %5 = vector.shape_cast %4 : vector<64xf32> to vector<64x1xf32>
    %cst_6 = arith.constant 3.906250e-03 : f32
    %6 = vector.broadcast %cst_6 : f32 to vector<64x1xf32>
    %7 = arith.mulf %5, %6 : vector<64x1xf32>
    %cst_7 = arith.constant dense<0.000000e+00> : vector<4x1xf32>
    %8 = tpu.matmul %0, %7, %cst_7 {dimension_numbers = #tpu.dot_dimension_numbers<[1], [0], [0], [1], [0, 0, 1, 1], [], []>} : vector<4x64xf32>, vector<64x1xf32>, vector<4x1xf32> -> vector<4x1xf32>
    %cst_8 = arith.constant 0.000000e+00 : f32
    %9 = vector.broadcast %cst_8 : f32 to vector<4x1xf32>
    %10 = arith.maximumf %8, %9 : vector<4x1xf32>
    %cst_9 = arith.constant dense<0.000000e+00> : vector<64x1xf32>
    %11 = tpu.matmul %1, %10, %cst_9 {dimension_numbers = #tpu.dot_dimension_numbers<[1], [0], [0], [1], [0, 0, 1, 1], [], []>} : vector<64x4xf32>, vector<4x1xf32>, vector<64x1xf32> -> vector<64x1xf32>
    %cst_10 = arith.constant 0.000000e+00 : f32
    %12 = vector.broadcast %cst_10 : f32 to vector<64x1xf32>
    %13 = arith.subf %12, %11 : vector<64x1xf32>
    %14 = math.exp %13 : vector<64x1xf32>
    %cst_11 = arith.constant 1.000000e+00 : f32
    %15 = vector.broadcast %cst_11 : f32 to vector<64x1xf32>
    %16 = arith.addf %15, %14 : vector<64x1xf32>
    %cst_12 = arith.constant 1.000000e+00 : f32
    %17 = vector.broadcast %cst_12 : f32 to vector<64x1xf32>
    %18 = arith.divf %17, %16 : vector<64x1xf32>
    %19 = vector.broadcast %18 : vector<64x1xf32> to vector<64x256xf32>
    %20 = arith.mulf %3, %19 : vector<64x256xf32>
    %c0_13 = arith.constant 0 : index
    %c0_14 = arith.constant 0 : index
    %c0_15 = arith.constant 0 : index
    %21 = vector.load %arg3[%c0_13, %c0_14, %c0_15] : memref<2x64x256xf32, #tpu.memory_space<vmem>>, vector<1x64x256xf32>
    %22 = vector.shape_cast %21 : vector<1x64x256xf32> to vector<64x256xf32>
    %23 = vector.shape_cast %20 : vector<64x256xf32> to vector<1x64x256xf32>
    tpu.vector_store %arg3[%c0_13, %c0_14, %c0_15], %23 {strides = array<i32>} : memref<2x64x256xf32, #tpu.memory_space<vmem>>, vector<1x64x256xf32>,
    %c1 = arith.constant 1 : index
    %c0_16 = arith.constant 0 : index
    %c0_17 = arith.constant 0 : index
    %24 = vector.load %arg0[%c1, %c0_16, %c0_17] : memref<2x64x256xf32, #tpu.memory_space<vmem>>, vector<1x64x256xf32>
    %25 = vector.shape_cast %24 : vector<1x64x256xf32> to vector<64x256xf32>
    %cst_18 = arith.constant dense<0.000000e+00> : vector<64xf32>
    %26 = vector.multi_reduction <add>, %25, %cst_18 [1] : vector<64x256xf32> to vector<64xf32>
    %27 = vector.shape_cast %26 : vector<64xf32> to vector<64x1xf32>
    %cst_19 = arith.constant 3.906250e-03 : f32
    %28 = vector.broadcast %cst_19 : f32 to vector<64x1xf32>
    %29 = arith.mulf %27, %28 : vector<64x1xf32>
    %cst_20 = arith.constant dense<0.000000e+00> : vector<4x1xf32>
    %30 = tpu.matmul %0, %29, %cst_20 {dimension_numbers = #tpu.dot_dimension_numbers<[1], [0], [0], [1], [0, 0, 1, 1], [], []>} : vector<4x64xf32>, vector<64x1xf32>, vector<4x1xf32> -> vector<4x1xf32>
    %cst_21 = arith.constant 0.000000e+00 : f32
    %31 = vector.broadcast %cst_21 : f32 to vector<4x1xf32>
    %32 = arith.maximumf %30, %31 : vector<4x1xf32>
    %cst_22 = arith.constant dense<0.000000e+00> : vector<64x1xf32>
    %33 = tpu.matmul %1, %32, %cst_22 {dimension_numbers = #tpu.dot_dimension_numbers<[1], [0], [0], [1], [0, 0, 1, 1], [], []>} : vector<64x4xf32>, vector<4x1xf32>, vector<64x1xf32> -> vector<64x1xf32>
    %cst_23 = arith.constant 0.000000e+00 : f32
    %34 = vector.broadcast %cst_23 : f32 to vector<64x1xf32>
    %35 = arith.subf %34, %33 : vector<64x1xf32>
    %36 = math.exp %35 : vector<64x1xf32>
    %cst_24 = arith.constant 1.000000e+00 : f32
    %37 = vector.broadcast %cst_24 : f32 to vector<64x1xf32>
    %38 = arith.addf %37, %36 : vector<64x1xf32>
    %cst_25 = arith.constant 1.000000e+00 : f32
    %39 = vector.broadcast %cst_25 : f32 to vector<64x1xf32>
    %40 = arith.divf %39, %38 : vector<64x1xf32>
    %41 = vector.broadcast %40 : vector<64x1xf32> to vector<64x256xf32>
    %42 = arith.mulf %25, %41 : vector<64x256xf32>
    %c1_26 = arith.constant 1 : index
    %c0_27 = arith.constant 0 : index
    %c0_28 = arith.constant 0 : index
    %43 = vector.load %arg3[%c1_26, %c0_27, %c0_28] : memref<2x64x256xf32, #tpu.memory_space<vmem>>, vector<1x64x256xf32>
    %44 = vector.shape_cast %43 : vector<1x64x256xf32> to vector<64x256xf32>
    %45 = vector.shape_cast %42 : vector<64x256xf32> to vector<1x64x256xf32>
    tpu.vector_store %arg3[%c1_26, %c0_27, %c0_28], %45 {strides = array<i32>} : memref<2x64x256xf32, #tpu.memory_space<vmem>>, vector<1x64x256xf32>,
    return
  }
}

</mosaic_0001>

<llo_original>
// kernel: tpu_custom_call.1
$region0: #{tpu_custom_call.1}
  #allocation0 [shape = 'u32[]', space=smem, size = 0x4, offset = 0x4, fixed_abs, tag = 'smem constant byte address 0x4 - core index']
  #allocation1 [shape = 'u32[72,128]{1,0:T(1,128)}', space=vmem, size = 0x9000, scoped, tag = 'internal scratch']
  %s0 = inlined_call_operand.hbm [shape: f32[2,64,256], index: 0, kind: input, shape index: {}]
  %s1 = inlined_call_operand.vmem [shape: f32[4,64], index: 1, kind: input, shape index: {}]
  %s2 = inlined_call_operand.vmem [shape: f32[64,4], index: 2, kind: input, shape index: {}]
  %s3 = inlined_call_operand.hbm [shape: f32[2,64,256], index: 3, kind: output, shape index: {}]
  %s4 = sld [smem:[#allocation0]]
  $region26: #{tpu_custom_call.1} parent=0
    _
  %s6 = ssub.s32 1, %s4
  %s7 = scalar_select 0, %s6, %s4
  $region1: #{tpu_custom_call.1} parent=0
    #allocation2 [shape = 'u8[131072]{0}', space=vmem, size = 0x20000, scoped, tag = 'input window, operand 0, single buffered']
    #allocation3 [shape = 's32[1]{0}', space=sflag, size = 0x4, scoped, tag = 'scoped memory for tpu_custom_call.1']
    #allocation4 [shape = 's32[1]{0}', space=sflag, size = 0x4, scoped, tag = 'scoped memory for tpu_custom_call.1']
    #allocation5 [shape = 'u8[131072]{0}', space=vmem, size = 0x20000, scoped, tag = 'output window, operand 0, single buffered']
    %8 = vsyncpa [#allocation3], 0
    %9 = vsyncpa [#allocation4], 0
    // Predicated region
    $region2: #{tpu_custom_call.1} parent=1 // pred_check
      _
    $region3: #{tpu_custom_call.1} parent=1 // pred_check_branch
      %11 = sbr.rel (0) target = $region5
    $region4: #{tpu_custom_call.1} parent=1 // pred_region
      %13 = vsyncadd [#allocation3], 0
      %s14 = sshll.u32 %s0, 4
      %s15 = int_to_ptr.hbm [resolvable:$true] %s14
      %s16 = sshll.u32 [#allocation2], 4
      %s17 = int_to_ptr.vmem [resolvable:$true] %s16
      %22 = dma.hbm_to_vmem [thread:$0]  %s15, 4096, %s17, [#allocation3], 256, 256, 16
    $region5: #{tpu_custom_call.1} parent=1 // pred_fallthru
      _
    // Predicated region
    $region6: #{tpu_custom_call.1} parent=1 // pred_check
      _
    $region7: #{tpu_custom_call.1} parent=1 // pred_check_branch
      %24 = sbr.rel (0) target = $region9
    $region8: #{tpu_custom_call.1} parent=1 // pred_region
      _
    $region9: #{tpu_custom_call.1} parent=1 // pred_fallthru
      _
    // Predicated region
    $region10: #{tpu_custom_call.1} parent=1 // pred_check
      _
    $region11: #{tpu_custom_call.1} parent=1 // pred_check_branch
      %26 = sbr.rel (0) target = $region13
    $region12: #{tpu_custom_call.1} parent=1 // pred_region
      _
    $region13: #{tpu_custom_call.1} parent=1 // pred_fallthru
      _
    // Predicated region
    $region14: #{tpu_custom_call.1} parent=1 // pred_check
      _
    $region15: #{tpu_custom_call.1} parent=1 // pred_check_branch
      %28 = sbr.rel (0) target = $region17
    $region16: #{tpu_custom_call.1} parent=1 // pred_region
      %30 = dma.done [#allocation3], 4096
    $region17: #{tpu_custom_call.1} parent=1 // pred_fallthru
      _
    %v31 = vld [vmem:[%s1] sm:$0xf]
    %v32 = vld [vmem:[%s2] sm:$0xff]
    %v33 = vld [vmem:[%s2 + $0x8] sm:$0xff]
    %v34 = vld [vmem:[%s2 + $0x10] sm:$0xff]
    %v35 = vld [vmem:[%s2 + $0x18] sm:$0xff]
    %v36 = vld [vmem:[%s2 + $0x20] sm:$0xff]
    %v37 = vld [vmem:[%s2 + $0x28] sm:$0xff]
    %v38 = vld [vmem:[%s2 + $0x30] sm:$0xff]
    %v39 = vld [vmem:[%s2 + $0x38] sm:$0xff]
    %v40 = vld [vmem:[#allocation2] sm:$0xff]
    %v41 = vld [vmem:[#allocation2 + $0x8] sm:$0xff]
    %v42 = vld [vmem:[#allocation2 + $0x10] sm:$0xff]
    %v43 = vld [vmem:[#allocation2 + $0x18] sm:$0xff]
    %v44 = vld [vmem:[#allocation2 + $0x20] sm:$0xff]
    %v45 = vld [vmem:[#allocation2 + $0x28] sm:$0xff]
    %v46 = vld [vmem:[#allocation2 + $0x30] sm:$0xff]
    %v47 = vld [vmem:[#allocation2 + $0x38] sm:$0xff]
    %v48 = vld [vmem:[#allocation2 + $0x40] sm:$0xff]
    %v49 = vld [vmem:[#allocation2 + $0x48] sm:$0xff]
    %v50 = vld [vmem:[#allocation2 + $0x50] sm:$0xff]
    %v51 = vld [vmem:[#allocation2 + $0x58] sm:$0xff]
    %v52 = vld [vmem:[#allocation2 + $0x60] sm:$0xff]
    %v53 = vld [vmem:[#allocation2 + $0x68] sm:$0xff]
    %v54 = vld [vmem:[#allocation2 + $0x70] sm:$0xff]
    %v55 = vld [vmem:[#allocation2 + $0x78] sm:$0xff]
    %v56 = vadd.f32 %v40, %v41
    %57 = vadd.xlane.f32.xlu0 %v56
    %v58 = vpop.xlane.xlu0 %57
    %v59 = vadd.f32 %v42, %v43
    %60 = vadd.xlane.f32.xlu0 %v59
    %v61 = vpop.xlane.xlu0 %60
    %v62 = vadd.f32 %v44, %v45
    %63 = vadd.xlane.f32.xlu0 %v62
    %v64 = vpop.xlane.xlu0 %63
    %v65 = vadd.f32 %v46, %v47
    %66 = vadd.xlane.f32.xlu0 %v65
    %v67 = vpop.xlane.xlu0 %66
    %v68 = vadd.f32 %v48, %v49
    %69 = vadd.xlane.f32.xlu0 %v68
    %v70 = vpop.xlane.xlu0 %69
    %v71 = vadd.f32 %v50, %v51
    %72 = vadd.xlane.f32.xlu0 %v71
    %v73 = vpop.xlane.xlu0 %72
    %v74 = vadd.f32 %v52, %v53
    %75 = vadd.xlane.f32.xlu0 %v74
    %v76 = vpop.xlane.xlu0 %75
    %v77 = vadd.f32 %v54, %v55
    %78 = vadd.xlane.f32.xlu0 %v77
    %v79 = vpop.xlane.xlu0 %78
    %v80 = vmul.f32 %v58, 0.00390625
    %v81 = vmul.f32 %v61, 0.00390625
    %v82 = vmul.f32 %v64, 0.00390625
    %v83 = vmul.f32 %v67, 0.00390625
    %v84 = vmul.f32 %v70, 0.00390625
    %v85 = vmul.f32 %v73, 0.00390625
    %v86 = vmul.f32 %v76, 0.00390625
    %v87 = vmul.f32 %v79, 0.00390625
    %vm88 = vcmask 523264
    %v90 = vsel %vm88, %v31, 0
    %92 = vmatpush.msra.mxu0 0.0
    %93 = vmatpush.msra.mxu0 0.0
    %94 = vmatpush.msra.mxu0 0.0
    %95 = vmatpush.msra.mxu0 0.0
    %96 = vmatpush.msra.mxu0 0.0
    %97 = vmatpush.msra.mxu0 0.0
    %98 = vmatpush.msra.mxu0 0.0
    %99 = vmatpush.msra.mxu0 0.0
    %100 = vmatpush.msra.mxu0 %v87
    %101 = vmatpush.msra.mxu0 %v86
    %102 = vmatpush.msra.mxu0 %v85
    %103 = vmatpush.msra.mxu0 %v84
    %104 = vmatpush.msra.mxu0 %v83
    %105 = vmatpush.msra.mxu0 %v82
    %106 = vmatpush.msra.mxu0 %v81
    %107 = vmatpush.msra.mxu0 %v80
    %108 = vmatmul.f32.gmra.mxu0 %v90
    %v109 = vpop.f32.mrf.mxu0
    %v110 = vadd.f32 0.0, %v109
    %111 = vdwg.mxu0
    %v112 = vmax.f32 %v110, 0.0
    %vm113 = vcmask 31744
    %v115 = vsel %vm113, %v32, 0
    %v118 = vsel %vm113, %v33, 0
    %v121 = vsel %vm113, %v34, 0
    %v124 = vsel %vm113, %v35, 0
    %v127 = vsel %vm113, %v36, 0
    %v130 = vsel %vm113, %v37, 0
    %v133 = vsel %vm113, %v38, 0
    %v136 = vsel %vm113, %v39, 0
    %vm138 = vcmask 1043456
    %v140 = vsel %vm138, %v112, 0
    %142 = vmatpush.msra.mxu0 0.0
    %143 = vmatpush.msra.mxu0 0.0
    %144 = vmatpush.msra.mxu0 0.0
    %145 = vmatpush.msra.mxu0 0.0
    %146 = vmatpush.msra.mxu0 0.0
    %147 = vmatpush.msra.mxu0 0.0
    %148 = vmatpush.msra.mxu0 0.0
    %149 = vmatpush.msra.mxu0 0.0
    %150 = vmatpush.msra.mxu0 0.0
    %151 = vmatpush.msra.mxu0 0.0
    %152 = vmatpush.msra.mxu0 0.0
    %153 = vmatpush.msra.mxu0 0.0
    %154 = vmatpush.msra.mxu0 0.0
    %155 = vmatpush.msra.mxu0 0.0
    %156 = vmatpush.msra.mxu0 0.0
    %157 = vmatpush.msra.mxu0 %v140
    %158 = vmatmul.f32.gmra.mxu0 %v115
    %v159 = vpop.f32.mrf.mxu0
    %v160 = vadd.f32 0.0, %v159
    %161 = vmatmul.f32.gmra.mxu0 %v118
    %v162 = vpop.f32.mrf.mxu0
    %v163 = vadd.f32 0.0, %v162
    %164 = vmatmul.f32.gmra.mxu0 %v121
    %v165 = vpop.f32.mrf.mxu0
    %v166 = vadd.f32 0.0, %v165
    %167 = vmatmul.f32.gmra.mxu0 %v124
    %v168 = vpop.f32.mrf.mxu0
    %v169 = vadd.f32 0.0, %v168
    %170 = vmatmul.f32.gmra.mxu0 %v127
    %v171 = vpop.f32.mrf.mxu0
    %v172 = vadd.f32 0.0, %v171
    %173 = vmatmul.f32.gmra.mxu0 %v130
    %v174 = vpop.f32.mrf.mxu0
    %v175 = vadd.f32 0.0, %v174
    %176 = vmatmul.f32.gmra.mxu0 %v133
    %v177 = vpop.f32.mrf.mxu0
    %v178 = vadd.f32 0.0, %v177
    %179 = vmatmul.f32.gmra.mxu0 %v136
    %v180 = vpop.f32.mrf.mxu0
    %v181 = vadd.f32 0.0, %v180
    %182 = vdwg.mxu0
    %v183 = vsub.f32 0.0, %v160
    %v184 = vsub.f32 0.0, %v163
    %v185 = vsub.f32 0.0, %v166
    %v186 = vsub.f32 0.0, %v169
    %v187 = vsub.f32 0.0, %v172
    %v188 = vsub.f32 0.0, %v175
    %v189 = vsub.f32 0.0, %v178
    %v190 = vsub.f32 0.0, %v181
    %v191 = vmul.f32 %v183, 1.442695
    %v192 = vpow.pop %v191
    %v193 = vmul.f32 %v184, 1.442695
    %v194 = vpow.pop %v193
    %v195 = vmul.f32 %v185, 1.442695
    %v196 = vpow.pop %v195
    %v197 = vmul.f32 %v186, 1.442695
    %v198 = vpow.pop %v197
    %v199 = vmul.f32 %v187, 1.442695
    %v200 = vpow.pop %v199
    %v201 = vmul.f32 %v188, 1.442695
    %v202 = vpow.pop %v201
    %v203 = vmul.f32 %v189, 1.442695
    %v204 = vpow.pop %v203
    %v205 = vmul.f32 %v190, 1.442695
    %v206 = vpow.pop %v205
    %v207 = vadd.f32 %v192, 1.0
    %v208 = vadd.f32 %v194, 1.0
    %v209 = vadd.f32 %v196, 1.0
    %v210 = vadd.f32 %v198, 1.0
    %v211 = vadd.f32 %v200, 1.0
    %v212 = vadd.f32 %v202, 1.0
    %v213 = vadd.f32 %v204, 1.0
    %v214 = vadd.f32 %v206, 1.0
    %v215 = vrcp.pop %v207
    %v216 = vmul.f32 %v207, %v215
    %v217 = vsub.f32 1.0, %v216
    %v218 = vmul.f32 %v215, %v217
    %v219 = vadd.f32 %v215, %v218
    %vm220 = vweird.f32 %v207
    %vm221 = vweird.f32 %v215
    %vm222 = vmor %vm220, %vm221
    %v223 = vsel %vm222, %v215, %v219
    %v224 = vand.u32 2147483647, %v207
    %vm225 = vcmp.eq.f32.partialorder %v224, 8.507059e+37
    %v226 = vand.u32 %v207, 2147483648
    %v227 = vor.u32 1.1754944e-38, %v226
    %v228 = vsel %vm225, %v227, %v223
    %v229 = vmul.f32 1.0, %v228
    %v230 = vrcp.pop %v208
    %v231 = vmul.f32 %v208, %v230
    %v232 = vsub.f32 1.0, %v231
    %v233 = vmul.f32 %v230, %v232
    %v234 = vadd.f32 %v230, %v233
    %vm235 = vweird.f32 %v208
    %vm236 = vweird.f32 %v230
    %vm237 = vmor %vm235, %vm236
    %v238 = vsel %vm237, %v230, %v234
    %v239 = vand.u32 2147483647, %v208
    %vm240 = vcmp.eq.f32.partialorder %v239, 8.507059e+37
    %v241 = vand.u32 %v208, 2147483648
    %v242 = vor.u32 1.1754944e-38, %v241
    %v243 = vsel %vm240, %v242, %v238
    %v244 = vmul.f32 1.0, %v243
    %v245 = vrcp.pop %v209
    %v246 = vmul.f32 %v209, %v245
    %v247 = vsub.f32 1.0, %v246
    %v248 = vmul.f32 %v245, %v247
    %v249 = vadd.f32 %v245, %v248
    %vm250 = vweird.f32 %v209
    %vm251 = vweird.f32 %v245
    %vm252 = vmor %vm250, %vm251
    %v253 = vsel %vm252, %v245, %v249
    %v254 = vand.u32 2147483647, %v209
    %vm255 = vcmp.eq.f32.partialorder %v254, 8.507059e+37
    %v256 = vand.u32 %v209, 2147483648
    %v257 = vor.u32 1.1754944e-38, %v256
    %v258 = vsel %vm255, %v257, %v253
    %v259 = vmul.f32 1.0, %v258
    %v260 = vrcp.pop %v210
    %v261 = vmul.f32 %v210, %v260
    %v262 = vsub.f32 1.0, %v261
    %v263 = vmul.f32 %v260, %v262
    %v264 = vadd.f32 %v260, %v263
    %vm265 = vweird.f32 %v210
    %vm266 = vweird.f32 %v260
    %vm267 = vmor %vm265, %vm266
    %v268 = vsel %vm267, %v260, %v264
    %v269 = vand.u32 2147483647, %v210
    %vm270 = vcmp.eq.f32.partialorder %v269, 8.507059e+37
    %v271 = vand.u32 %v210, 2147483648
    %v272 = vor.u32 1.1754944e-38, %v271
    %v273 = vsel %vm270, %v272, %v268
    %v274 = vmul.f32 1.0, %v273
    %v275 = vrcp.pop %v211
    %v276 = vmul.f32 %v211, %v275
    %v277 = vsub.f32 1.0, %v276
    %v278 = vmul.f32 %v275, %v277
    %v279 = vadd.f32 %v275, %v278
    %vm280 = vweird.f32 %v211
    %vm281 = vweird.f32 %v275
    %vm282 = vmor %vm280, %vm281
    %v283 = vsel %vm282, %v275, %v279
    %v284 = vand.u32 2147483647, %v211
    %vm285 = vcmp.eq.f32.partialorder %v284, 8.507059e+37
    %v286 = vand.u32 %v211, 2147483648
    %v287 = vor.u32 1.1754944e-38, %v286
    %v288 = vsel %vm285, %v287, %v283
    %v289 = vmul.f32 1.0, %v288
    %v290 = vrcp.pop %v212
    %v291 = vmul.f32 %v212, %v290
    %v292 = vsub.f32 1.0, %v291
    %v293 = vmul.f32 %v290, %v292
    %v294 = vadd.f32 %v290, %v293
    %vm295 = vweird.f32 %v212
    %vm296 = vweird.f32 %v290
    %vm297 = vmor %vm295, %vm296
    %v298 = vsel %vm297, %v290, %v294
    %v299 = vand.u32 2147483647, %v212
    %vm300 = vcmp.eq.f32.partialorder %v299, 8.507059e+37
    %v301 = vand.u32 %v212, 2147483648
    %v302 = vor.u32 1.1754944e-38, %v301
    %v303 = vsel %vm300, %v302, %v298
    %v304 = vmul.f32 1.0, %v303
    %v305 = vrcp.pop %v213
    %v306 = vmul.f32 %v213, %v305
    %v307 = vsub.f32 1.0, %v306
    %v308 = vmul.f32 %v305, %v307
    %v309 = vadd.f32 %v305, %v308
    %vm310 = vweird.f32 %v213
    %vm311 = vweird.f32 %v305
    %vm312 = vmor %vm310, %vm311
    %v313 = vsel %vm312, %v305, %v309
    %v314 = vand.u32 2147483647, %v213
    %vm315 = vcmp.eq.f32.partialorder %v314, 8.507059e+37
    %v316 = vand.u32 %v213, 2147483648
    %v317 = vor.u32 1.1754944e-38, %v316
    %v318 = vsel %vm315, %v317, %v313
    %v319 = vmul.f32 1.0, %v318
    %v320 = vrcp.pop %v214
    %v321 = vmul.f32 %v214, %v320
    %v322 = vsub.f32 1.0, %v321
    %v323 = vmul.f32 %v320, %v322
    %v324 = vadd.f32 %v320, %v323
    %vm325 = vweird.f32 %v214
    %vm326 = vweird.f32 %v320
    %vm327 = vmor %vm325, %vm326
    %v328 = vsel %vm327, %v320, %v324
    %v329 = vand.u32 2147483647, %v214
    %vm330 = vcmp.eq.f32.partialorder %v329, 8.507059e+37
    %v331 = vand.u32 %v214, 2147483648
    %v332 = vor.u32 1.1754944e-38, %v331
    %v333 = vsel %vm330, %v332, %v328
    %v334 = vmul.f32 1.0, %v333
    %336 = vset.pattern.permute.xlu0 0
    %337 = vperm.xlu0 %336, %v229
    %v338 = vpop.permute.xlu0 %337
    %341 = vset.pattern.permute.xlu0 0
    %342 = vperm.xlu0 %341, %v244
    %v343 = vpop.permute.xlu0 %342
    %346 = vset.pattern.permute.xlu0 0
    %347 = vperm.xlu0 %346, %v259
    %v348 = vpop.permute.xlu0 %347
    %351 = vset.pattern.permute.xlu0 0
    %352 = vperm.xlu0 %351, %v274
    %v353 = vpop.permute.xlu0 %352
    %356 = vset.pattern.permute.xlu0 0
    %357 = vperm.xlu0 %356, %v289
    %v358 = vpop.permute.xlu0 %357
    %361 = vset.pattern.permute.xlu0 0
    %362 = vperm.xlu0 %361, %v304
    %v363 = vpop.permute.xlu0 %362
    %366 = vset.pattern.permute.xlu0 0
    %367 = vperm.xlu0 %366, %v319
    %v368 = vpop.permute.xlu0 %367
    %371 = vset.pattern.permute.xlu0 0
    %372 = vperm.xlu0 %371, %v334
    %v373 = vpop.permute.xlu0 %372
    %v375 = vmul.f32 %v40, %v338
    %v376 = vmul.f32 %v41, %v338
    %v377 = vmul.f32 %v42, %v343
    %v378 = vmul.f32 %v43, %v343
    %v379 = vmul.f32 %v44, %v348
    %v380 = vmul.f32 %v45, %v348
    %v381 = vmul.f32 %v46, %v353
    %v382 = vmul.f32 %v47, %v353
    %v383 = vmul.f32 %v48, %v358
    %v384 = vmul.f32 %v49, %v358
    %v385 = vmul.f32 %v50, %v363
    %v386 = vmul.f32 %v51, %v363
    %v387 = vmul.f32 %v52, %v368
    %v388 = vmul.f32 %v53, %v368
    %v389 = vmul.f32 %v54, %v373
    %v390 = vmul.f32 %v55, %v373
    %391 = vst [vmem:[#allocation5] sm:$0xff] %v375
    %392 = vst [vmem:[#allocation5 + $0x8] sm:$0xff] %v376
    %393 = vst [vmem:[#allocation5 + $0x10] sm:$0xff] %v377
    %394 = vst [vmem:[#allocation5 + $0x18] sm:$0xff] %v378
    %395 = vst [vmem:[#allocation5 + $0x20] sm:$0xff] %v379
    %396 = vst [vmem:[#allocation5 + $0x28] sm:$0xff] %v380
    %397 = vst [vmem:[#allocation5 + $0x30] sm:$0xff] %v381
    %398 = vst [vmem:[#allocation5 + $0x38] sm:$0xff] %v382
    %399 = vst [vmem:[#allocation5 + $0x40] sm:$0xff] %v383
    %400 = vst [vmem:[#allocation5 + $0x48] sm:$0xff] %v384
    %401 = vst [vmem:[#allocation5 + $0x50] sm:$0xff] %v385
    %402 = vst [vmem:[#allocation5 + $0x58] sm:$0xff] %v386
    %403 = vst [vmem:[#allocation5 + $0x60] sm:$0xff] %v387
    %404 = vst [vmem:[#allocation5 + $0x68] sm:$0xff] %v388
    %405 = vst [vmem:[#allocation5 + $0x70] sm:$0xff] %v389
    %406 = vst [vmem:[#allocation5 + $0x78] sm:$0xff] %v390
    %s407 = scalar_lea.vmem [#allocation2], 128
    %v408 = vld [vmem:[%s407] sm:$0xff]
    %v409 = vld [vmem:[%s407 + $0x8] sm:$0xff]
    %v410 = vld [vmem:[%s407 + $0x10] sm:$0xff]
    %v411 = vld [vmem:[%s407 + $0x18] sm:$0xff]
    %v412 = vld [vmem:[%s407 + $0x20] sm:$0xff]
    %v413 = vld [vmem:[%s407 + $0x28] sm:$0xff]
    %v414 = vld [vmem:[%s407 + $0x30] sm:$0xff]
    %v415 = vld [vmem:[%s407 + $0x38] sm:$0xff]
    %v416 = vld [vmem:[%s407 + $0x40] sm:$0xff]
    %v417 = vld [vmem:[%s407 + $0x48] sm:$0xff]
    %v418 = vld [vmem:[%s407 + $0x50] sm:$0xff]
    %v419 = vld [vmem:[%s407 + $0x58] sm:$0xff]
    %v420 = vld [vmem:[%s407 + $0x60] sm:$0xff]
    %v421 = vld [vmem:[%s407 + $0x68] sm:$0xff]
    %v422 = vld [vmem:[%s407 + $0x70] sm:$0xff]
    %v423 = vld [vmem:[%s407 + $0x78] sm:$0xff]
    %v424 = vadd.f32 %v408, %v409
    %425 = vadd.xlane.f32.xlu0 %v424
    %v426 = vpop.xlane.xlu0 %425
    %v427 = vadd.f32 %v410, %v411
    %428 = vadd.xlane.f32.xlu0 %v427
    %v429 = vpop.xlane.xlu0 %428
    %v430 = vadd.f32 %v412, %v413
    %431 = vadd.xlane.f32.xlu0 %v430
    %v432 = vpop.xlane.xlu0 %431
    %v433 = vadd.f32 %v414, %v415
    %434 = vadd.xlane.f32.xlu0 %v433
    %v435 = vpop.xlane.xlu0 %434
    %v436 = vadd.f32 %v416, %v417
    %437 = vadd.xlane.f32.xlu0 %v436
    %v438 = vpop.xlane.xlu0 %437
    %v439 = vadd.f32 %v418, %v419
    %440 = vadd.xlane.f32.xlu0 %v439
    %v441 = vpop.xlane.xlu0 %440
    %v442 = vadd.f32 %v420, %v421
    %443 = vadd.xlane.f32.xlu0 %v442
    %v444 = vpop.xlane.xlu0 %443
    %v445 = vadd.f32 %v422, %v423
    %446 = vadd.xlane.f32.xlu0 %v445
    %v447 = vpop.xlane.xlu0 %446
    %v448 = vmul.f32 %v426, 0.00390625
    %v449 = vmul.f32 %v429, 0.00390625
    %v450 = vmul.f32 %v432, 0.00390625
    %v451 = vmul.f32 %v435, 0.00390625
    %v452 = vmul.f32 %v438, 0.00390625
    %v453 = vmul.f32 %v441, 0.00390625
    %v454 = vmul.f32 %v444, 0.00390625
    %v455 = vmul.f32 %v447, 0.00390625
    %456 = vmatpush.msra.mxu0 0.0
    %457 = vmatpush.msra.mxu0 0.0
    %458 = vmatpush.msra.mxu0 0.0
    %459 = vmatpush.msra.mxu0 0.0
    %460 = vmatpush.msra.mxu0 0.0
    %461 = vmatpush.msra.mxu0 0.0
    %462 = vmatpush.msra.mxu0 0.0
    %463 = vmatpush.msra.mxu0 0.0
    %464 = vmatpush.msra.mxu0 %v455
    %465 = vmatpush.msra.mxu0 %v454
    %466 = vmatpush.msra.mxu0 %v453
    %467 = vmatpush.msra.mxu0 %v452
    %468 = vmatpush.msra.mxu0 %v451
    %469 = vmatpush.msra.mxu0 %v450
    %470 = vmatpush.msra.mxu0 %v449
    %471 = vmatpush.msra.mxu0 %v448
    %472 = vmatmul.f32.gmra.mxu0 %v90
    %v473 = vpop.f32.mrf.mxu0
    %v474 = vadd.f32 0.0, %v473
    %475 = vdwg.mxu0
    %v476 = vmax.f32 %v474, 0.0
    %v478 = vsel %vm138, %v476, 0
    %480 = vmatpush.msra.mxu0 0.0
    %481 = vmatpush.msra.mxu0 0.0
    %482 = vmatpush.msra.mxu0 0.0
    %483 = vmatpush.msra.mxu0 0.0
    %484 = vmatpush.msra.mxu0 0.0
    %485 = vmatpush.msra.mxu0 0.0
    %486 = vmatpush.msra.mxu0 0.0
    %487 = vmatpush.msra.mxu0 0.0
    %488 = vmatpush.msra.mxu0 0.0
    %489 = vmatpush.msra.mxu0 0.0
    %490 = vmatpush.msra.mxu0 0.0
    %491 = vmatpush.msra.mxu0 0.0
    %492 = vmatpush.msra.mxu0 0.0
    %493 = vmatpush.msra.mxu0 0.0
    %494 = vmatpush.msra.mxu0 0.0
    %495 = vmatpush.msra.mxu0 %v478
    %496 = vmatmul.f32.gmra.mxu0 %v115
    %v497 = vpop.f32.mrf.mxu0
    %v498 = vadd.f32 0.0, %v497
    %499 = vmatmul.f32.gmra.mxu0 %v118
    %v500 = vpop.f32.mrf.mxu0
    %v501 = vadd.f32 0.0, %v500
    %502 = vmatmul.f32.gmra.mxu0 %v121
    %v503 = vpop.f32.mrf.mxu0
    %v504 = vadd.f32 0.0, %v503
    %505 = vmatmul.f32.gmra.mxu0 %v124
    %v506 = vpop.f32.mrf.mxu0
    %v507 = vadd.f32 0.0, %v506
    %508 = vmatmul.f32.gmra.mxu0 %v127
    %v509 = vpop.f32.mrf.mxu0
    %v510 = vadd.f32 0.0, %v509
    %511 = vmatmul.f32.gmra.mxu0 %v130
    %v512 = vpop.f32.mrf.mxu0
    %v513 = vadd.f32 0.0, %v512
    %514 = vmatmul.f32.gmra.mxu0 %v133
    %v515 = vpop.f32.mrf.mxu0
    %v516 = vadd.f32 0.0, %v515
    %517 = vmatmul.f32.gmra.mxu0 %v136
    %v518 = vpop.f32.mrf.mxu0
    %v519 = vadd.f32 0.0, %v518
    %520 = vdwg.mxu0
    %v521 = vsub.f32 0.0, %v498
    %v522 = vsub.f32 0.0, %v501
    %v523 = vsub.f32 0.0, %v504
    %v524 = vsub.f32 0.0, %v507
    %v525 = vsub.f32 0.0, %v510
    %v526 = vsub.f32 0.0, %v513
    %v527 = vsub.f32 0.0, %v516
    %v528 = vsub.f32 0.0, %v519
    %v529 = vmul.f32 %v521, 1.442695
    %v530 = vpow.pop %v529
    %v531 = vmul.f32 %v522, 1.442695
    %v532 = vpow.pop %v531
    %v533 = vmul.f32 %v523, 1.442695
    %v534 = vpow.pop %v533
    %v535 = vmul.f32 %v524, 1.442695
    %v536 = vpow.pop %v535
    %v537 = vmul.f32 %v525, 1.442695
    %v538 = vpow.pop %v537
    %v539 = vmul.f32 %v526, 1.442695
    %v540 = vpow.pop %v539
    %v541 = vmul.f32 %v527, 1.442695
    %v542 = vpow.pop %v541
    %v543 = vmul.f32 %v528, 1.442695
    %v544 = vpow.pop %v543
    %v545 = vadd.f32 %v530, 1.0
    %v546 = vadd.f32 %v532, 1.0
    %v547 = vadd.f32 %v534, 1.0
    %v548 = vadd.f32 %v536, 1.0
    %v549 = vadd.f32 %v538, 1.0
    %v550 = vadd.f32 %v540, 1.0
    %v551 = vadd.f32 %v542, 1.0
    %v552 = vadd.f32 %v544, 1.0
    %v553 = vrcp.pop %v545
    %v554 = vmul.f32 %v545, %v553
    %v555 = vsub.f32 1.0, %v554
    %v556 = vmul.f32 %v553, %v555
    %v557 = vadd.f32 %v553, %v556
    %vm558 = vweird.f32 %v545
    %vm559 = vweird.f32 %v553
    %vm560 = vmor %vm558, %vm559
    %v561 = vsel %vm560, %v553, %v557
    %v562 = vand.u32 2147483647, %v545
    %vm563 = vcmp.eq.f32.partialorder %v562, 8.507059e+37
    %v564 = vand.u32 %v545, 2147483648
    %v565 = vor.u32 1.1754944e-38, %v564
    %v566 = vsel %vm563, %v565, %v561
    %v567 = vmul.f32 1.0, %v566
    %v568 = vrcp.pop %v546
    %v569 = vmul.f32 %v546, %v568
    %v570 = vsub.f32 1.0, %v569
    %v571 = vmul.f32 %v568, %v570
    %v572 = vadd.f32 %v568, %v571
    %vm573 = vweird.f32 %v546
    %vm574 = vweird.f32 %v568
    %vm575 = vmor %vm573, %vm574
    %v576 = vsel %vm575, %v568, %v572
    %v577 = vand.u32 2147483647, %v546
    %vm578 = vcmp.eq.f32.partialorder %v577, 8.507059e+37
    %v579 = vand.u32 %v546, 2147483648
    %v580 = vor.u32 1.1754944e-38, %v579
    %v581 = vsel %vm578, %v580, %v576
    %v582 = vmul.f32 1.0, %v581
    %v583 = vrcp.pop %v547
    %v584 = vmul.f32 %v547, %v583
    %v585 = vsub.f32 1.0, %v584
    %v586 = vmul.f32 %v583, %v585
    %v587 = vadd.f32 %v583, %v586
    %vm588 = vweird.f32 %v547
    %vm589 = vweird.f32 %v583
    %vm590 = vmor %vm588, %vm589
    %v591 = vsel %vm590, %v583, %v587
    %v592 = vand.u32 2147483647, %v547
    %vm593 = vcmp.eq.f32.partialorder %v592, 8.507059e+37
    %v594 = vand.u32 %v547, 2147483648
    %v595 = vor.u32 1.1754944e-38, %v594
    %v596 = vsel %vm593, %v595, %v591
    %v597 = vmul.f32 1.0, %v596
    %v598 = vrcp.pop %v548
    %v599 = vmul.f32 %v548, %v598
    %v600 = vsub.f32 1.0, %v599
    %v601 = vmul.f32 %v598, %v600
    %v602 = vadd.f32 %v598, %v601
    %vm603 = vweird.f32 %v548
    %vm604 = vweird.f32 %v598
    %vm605 = vmor %vm603, %vm604
    %v606 = vsel %vm605, %v598, %v602
    %v607 = vand.u32 2147483647, %v548
    %vm608 = vcmp.eq.f32.partialorder %v607, 8.507059e+37
    %v609 = vand.u32 %v548, 2147483648
    %v610 = vor.u32 1.1754944e-38, %v609
    %v611 = vsel %vm608, %v610, %v606
    %v612 = vmul.f32 1.0, %v611
    %v613 = vrcp.pop %v549
    %v614 = vmul.f32 %v549, %v613
    %v615 = vsub.f32 1.0, %v614
    %v616 = vmul.f32 %v613, %v615
    %v617 = vadd.f32 %v613, %v616
    %vm618 = vweird.f32 %v549
    %vm619 = vweird.f32 %v613
    %vm620 = vmor %vm618, %vm619
    %v621 = vsel %vm620, %v613, %v617
    %v622 = vand.u32 2147483647, %v549
    %vm623 = vcmp.eq.f32.partialorder %v622, 8.507059e+37
    %v624 = vand.u32 %v549, 2147483648
    %v625 = vor.u32 1.1754944e-38, %v624
    %v626 = vsel %vm623, %v625, %v621
    %v627 = vmul.f32 1.0, %v626
    %v628 = vrcp.pop %v550
    %v629 = vmul.f32 %v550, %v628
    %v630 = vsub.f32 1.0, %v629
    %v631 = vmul.f32 %v628, %v630
    %v632 = vadd.f32 %v628, %v631
    %vm633 = vweird.f32 %v550
    %vm634 = vweird.f32 %v628
    %vm635 = vmor %vm633, %vm634
    %v636 = vsel %vm635, %v628, %v632
    %v637 = vand.u32 2147483647, %v550
    %vm638 = vcmp.eq.f32.partialorder %v637, 8.507059e+37
    %v639 = vand.u32 %v550, 2147483648
    %v640 = vor.u32 1.1754944e-38, %v639
    %v641 = vsel %vm638, %v640, %v636
    %v642 = vmul.f32 1.0, %v641
    %v643 = vrcp.pop %v551
    %v644 = vmul.f32 %v551, %v643
    %v645 = vsub.f32 1.0, %v644
    %v646 = vmul.f32 %v643, %v645
    %v647 = vadd.f32 %v643, %v646
    %vm648 = vweird.f32 %v551
    %vm649 = vweird.f32 %v643
    %vm650 = vmor %vm648, %vm649
    %v651 = vsel %vm650, %v643, %v647
    %v652 = vand.u32 2147483647, %v551
    %vm653 = vcmp.eq.f32.partialorder %v652, 8.507059e+37
    %v654 = vand.u32 %v551, 2147483648
    %v655 = vor.u32 1.1754944e-38, %v654
    %v656 = vsel %vm653, %v655, %v651
    %v657 = vmul.f32 1.0, %v656
    %v658 = vrcp.pop %v552
    %v659 = vmul.f32 %v552, %v658
    %v660 = vsub.f32 1.0, %v659
    %v661 = vmul.f32 %v658, %v660
    %v662 = vadd.f32 %v658, %v661
    %vm663 = vweird.f32 %v552
    %vm664 = vweird.f32 %v658
    %vm665 = vmor %vm663, %vm664
    %v666 = vsel %vm665, %v658, %v662
    %v667 = vand.u32 2147483647, %v552
    %vm668 = vcmp.eq.f32.partialorder %v667, 8.507059e+37
    %v669 = vand.u32 %v552, 2147483648
    %v670 = vor.u32 1.1754944e-38, %v669
    %v671 = vsel %vm668, %v670, %v666
    %v672 = vmul.f32 1.0, %v671
    %674 = vset.pattern.permute.xlu0 0
    %675 = vperm.xlu0 %674, %v567
    %v676 = vpop.permute.xlu0 %675
    %679 = vset.pattern.permute.xlu0 0
    %680 = vperm.xlu0 %679, %v582
    %v681 = vpop.permute.xlu0 %680
    %684 = vset.pattern.permute.xlu0 0
    %685 = vperm.xlu0 %684, %v597
    %v686 = vpop.permute.xlu0 %685
    %689 = vset.pattern.permute.xlu0 0
    %690 = vperm.xlu0 %689, %v612
    %v691 = vpop.permute.xlu0 %690
    %694 = vset.pattern.permute.xlu0 0
    %695 = vperm.xlu0 %694, %v627
    %v696 = vpop.permute.xlu0 %695
    %699 = vset.pattern.permute.xlu0 0
    %700 = vperm.xlu0 %699, %v642
    %v701 = vpop.permute.xlu0 %700
    %704 = vset.pattern.permute.xlu0 0
    %705 = vperm.xlu0 %704, %v657
    %v706 = vpop.permute.xlu0 %705
    %709 = vset.pattern.permute.xlu0 0
    %710 = vperm.xlu0 %709, %v672
    %v711 = vpop.permute.xlu0 %710
    %v713 = vmul.f32 %v408, %v676
    %v714 = vmul.f32 %v409, %v676
    %v715 = vmul.f32 %v410, %v681
    %v716 = vmul.f32 %v411, %v681
    %v717 = vmul.f32 %v412, %v686
    %v718 = vmul.f32 %v413, %v686
    %v719 = vmul.f32 %v414, %v691
    %v720 = vmul.f32 %v415, %v691
    %v721 = vmul.f32 %v416, %v696
    %v722 = vmul.f32 %v417, %v696
    %v723 = vmul.f32 %v418, %v701
    %v724 = vmul.f32 %v419, %v701
    %v725 = vmul.f32 %v420, %v706
    %v726 = vmul.f32 %v421, %v706
    %v727 = vmul.f32 %v422, %v711
    %v728 = vmul.f32 %v423, %v711
    %s729 = scalar_lea.vmem [#allocation5], 128
    %730 = vst [vmem:[%s729] sm:$0xff] %v713
    %731 = vst [vmem:[%s729 + $0x8] sm:$0xff] %v714
    %732 = vst [vmem:[%s729 + $0x10] sm:$0xff] %v715
    %733 = vst [vmem:[%s729 + $0x18] sm:$0xff] %v716
    %734 = vst [vmem:[%s729 + $0x20] sm:$0xff] %v717
    %735 = vst [vmem:[%s729 + $0x28] sm:$0xff] %v718
    %736 = vst [vmem:[%s729 + $0x30] sm:$0xff] %v719
    %737 = vst [vmem:[%s729 + $0x38] sm:$0xff] %v720
    %738 = vst [vmem:[%s729 + $0x40] sm:$0xff] %v721
    %739 = vst [vmem:[%s729 + $0x48] sm:$0xff] %v722
    %740 = vst [vmem:[%s729 + $0x50] sm:$0xff] %v723
    %741 = vst [vmem:[%s729 + $0x58] sm:$0xff] %v724
    %742 = vst [vmem:[%s729 + $0x60] sm:$0xff] %v725
    %743 = vst [vmem:[%s729 + $0x68] sm:$0xff] %v726
    %744 = vst [vmem:[%s729 + $0x70] sm:$0xff] %v727
    %745 = vst [vmem:[%s729 + $0x78] sm:$0xff] %v728
    // Predicated region
    $region18: #{tpu_custom_call.1} parent=1 // pred_check
      _
    $region19: #{tpu_custom_call.1} parent=1 // pred_check_branch
      %747 = sbr.rel (0) target = $region21
    $region20: #{tpu_custom_call.1} parent=1 // pred_region
      %749 = vsyncadd [#allocation4], 0
      %s750 = sshll.u32 [#allocation5], 4
      %s751 = int_to_ptr.vmem [resolvable:$true] %s750
      %s752 = sshll.u32 %s3, 4
      %s753 = int_to_ptr.hbm [resolvable:$true] %s752
      %758 = dma.vmem_to_hbm [thread:$0]  %s751, 4096, %s753, [#allocation4], 256, 256, 16
    $region21: #{tpu_custom_call.1} parent=1 // pred_fallthru
      _
    // Predicated region
    $region22: #{tpu_custom_call.1} parent=1 // pred_check
      _
    $region23: #{tpu_custom_call.1} parent=1 // pred_check_branch
      %760 = sbr.rel (0) target = $region25
    $region24: #{tpu_custom_call.1} parent=1 // pred_region
      %762 = dma.done [#allocation4], 4096
    $region25: #{tpu_custom_call.1} parent=1 // pred_fallthru
      _
    %763 = vsyncpa [#allocation3], 1
    %764 = vsyncpa [#allocation4], 1

</llo_original>
